<compile_context>
chip_gen: v6e
topology: v6e:2x2x1
jax: 0.10.0
libtpu: 0.0.40
codegen_flags: <defaults>
</compile_context>

<pallas_src>
import functools

import jax
import jax.numpy as jnp
from jax.experimental import pallas as pl
from jax.experimental.pallas import tpu as pltpu

EPS = 1e8  # matches the PyTorch default eps=100000000.0
_MiB = 1024 * 1024


def _round_up(x, m):
    return -(-x // m) * m


def _vmem_limit_bytes():
    """Scoped-VMEM limit: ~half physical VMEM, capped at 64 MiB.

    v5e/v6e (128 MiB physical) -> 64 MiB; v7x (64 MiB physical) -> 32 MiB.
    """
    try:
        cap = pltpu.get_tpu_info().vmem_capacity_bytes
    except Exception:  # introspection unavailable -> assume v5e/v6e class
        cap = 128 * _MiB
    return int(min(64 * _MiB, cap // 2))


def _pick_tile_rows(rows, n, logits_dtype, mask_dtype, vmem_limit):
    """Largest row block whose double-buffered working set is ~60% of VMEM."""
    bytes_per_row = n * (
        jnp.dtype(logits_dtype).itemsize      # logits in
        + jnp.dtype(mask_dtype).itemsize      # mask in (narrow dtype ok)
        + jnp.dtype(logits_dtype).itemsize    # out
    )
    budget = int(0.6 * vmem_limit)
    cap = budget // (2 * bytes_per_row)       # x2: double-buffered pipeline
    cap = max(32, (cap // 32) * 32)           # multiple of 32 (int8 sublane pack)
    cap = min(cap, 2048)
    # Keep at least 2 grid steps when the problem allows, so the "parallel"
    # axis can be sharded across the 2 TensorCores on v7x.
    if rows > 32:
        cap = min(cap, max(32, _round_up(_round_up(rows, 32) // 2, 32)))
    return int(min(cap, _round_up(rows, 32)))


def _masked_softmax_kernel(logits_ref, mask_ref, out_ref, *, eps):
    x = logits_ref[...].astype(jnp.float32)
    m = mask_ref[...].astype(jnp.float32)
    # Shift-invariance: the reference's raw-logit max subtraction is subsumed
    # by the single post-mask stabilization below.
    y = x - eps * m
    y = y - jnp.max(y, axis=-1, keepdims=True)
    e = jnp.exp(y)
    denom = jnp.sum(e, axis=-1, keepdims=True)
    out_ref[...] = (e * pl.reciprocal(denom, approx=False)).astype(out_ref.dtype)


def masked_stable_softmax(logits, mask, eps=EPS, tile_rows=None):
    """Masked stable softmax over the last axis.

    logits: (..., N) float array.
    mask:   (..., N), nonzero where the position is NOT playable.  Pass it in a
            narrow dtype (bool/int8) to minimize HBM traffic; it is consumed
            as-is (no widening copy in HBM).
    """
    orig_shape = logits.shape
    n = orig_shape[-1]
    rows = 1
    for d in orig_shape[:-1]:
        rows *= d

    logits2d = logits.reshape(rows, n)
    mask2d = mask.reshape(rows, n)  # keep original (narrow) dtype

    vmem_limit = _vmem_limit_bytes()
    if tile_rows is None:
        tile_rows = _pick_tile_rows(rows, n, logits2d.dtype, mask2d.dtype, vmem_limit)

    grid_rows = pl.cdiv(rows, tile_rows)
    padded_rows = grid_rows * tile_rows
    if padded_rows != rows:
        pad = padded_rows - rows
        logits2d = jnp.pad(logits2d, ((0, pad), (0, 0)))
        mask2d = jnp.pad(mask2d, ((0, pad), (0, 0)))

    kernel = functools.partial(_masked_softmax_kernel, eps=eps)

    out = pl.pallas_call(
        kernel,
        out_shape=jax.ShapeDtypeStruct((padded_rows, n), logits.dtype),
        grid_spec=pltpu.PrefetchScalarGridSpec(
            num_scalar_prefetch=0,
            grid=(grid_rows,),
            in_specs=[
                pl.BlockSpec((tile_rows, n), lambda i: (i, 0)),
                pl.BlockSpec((tile_rows, n), lambda i: (i, 0)),
            ],
            out_specs=pl.BlockSpec((tile_rows, n), lambda i: (i, 0)),
        ),
        compiler_params=pltpu.CompilerParams(
            dimension_semantics=("parallel",),
            vmem_limit_bytes=vmem_limit,
        ),
    )(logits2d, mask2d)

    if padded_rows != rows:
        out = out[:rows]
    return out.reshape(orig_shape)


def all_rows_playable(mask):
    """Device-side flag equivalent of the PyTorch 'No playable tile' check.

    Returns a 0-d bool device array; the caller decides when (if ever) to sync.
    """
    return jnp.all(jnp.any(mask == 0, axis=-1))


if __name__ == "__main__":
    key = jax.random.PRNGKey(0)
    k1, k2 = jax.random.split(key)

    batch, seq, n = 2, 8, 128
    logits = jax.random.normal(k1, (batch, seq, n), dtype=jnp.float32)
    # mask: 1 = masked (not playable), 0 = playable.  Narrow dtype (int8) cuts
    # HBM bytes; column 0 is always playable so every row has a playable tile.
    mask = (jax.random.uniform(k2, (batch, seq, n)) < 0.3).astype(jnp.int8)
    mask = mask.at[..., 0].set(0)

    fwd = jax.jit(masked_stable_softmax)
    out = jax.block_until_ready(fwd(logits, mask))

    # Validity check off the hot path: a single host sync after the kernel ran.
    # TODO(synk): in-graph raising has no Pallas equivalent; callers should use
    # all_rows_playable() (or jax.experimental.checkify) as needed.
    if not bool(jax.device_get(all_rows_playable(mask))):
        raise Exception("No playable tile")

    # Sanity check against a plain-JAX reference of the PyTorch semantics.
    ref_x = logits - jnp.max(logits, axis=-1, keepdims=True)
    ref = jax.nn.softmax(ref_x - EPS * mask.astype(jnp.float32), axis=-1)
    assert jnp.allclose(out, ref, atol=1e-6, rtol=1e-5), "mismatch vs reference"
    assert jnp.allclose(jnp.sum(out, axis=-1), 1.0, atol=1e-5), "rows don't sum to 1"

    print("KERNEL_OK")
</pallas_src>

<mosaic_0001>
module attributes {stable_mosaic.version = 11 : i64} {
  func.func @_masked_softmax_kernel(%arg0: i32, %arg1: memref<32x128xf32, #tpu.memory_space<vmem>>, %arg2: memref<32x128xi8, #tpu.memory_space<vmem>>, %arg3: memref<32x128xf32, #tpu.memory_space<vmem>>) attributes {dimension_semantics = [#tpu.dimension_semantics<parallel>], iteration_bounds = array<i64: 1>, scalar_prefetch = 0 : i64, scratch_operands = 0 : i64, tpu.core_type = #tpu.core_type<tc>, window_params = [{transform_indices = @transform_0, window_bounds = array<i64: 32, 128>}, {transform_indices = @transform_1, window_bounds = array<i64: 32, 128>}, {transform_indices = @transform_2, window_bounds = array<i64: 32, 128>}]} {
    %c0 = arith.constant 0 : index
    %c0_0 = arith.constant 0 : index
    %0 = vector.load %arg1[%c0, %c0_0] : memref<32x128xf32, #tpu.memory_space<vmem>>, vector<32x128xf32>
    %c0_1 = arith.constant 0 : index
    %c0_2 = arith.constant 0 : index
    %1 = vector.load %arg2[%c0_1, %c0_2] : memref<32x128xi8, #tpu.memory_space<vmem>>, vector<32x128xi8>
    %2 = arith.sitofp %1 : vector<32x128xi8> to vector<32x128xf32>
    %cst = arith.constant 1.000000e+08 : f32
    %3 = vector.broadcast %cst : f32 to vector<32x128xf32>
    %4 = arith.mulf %3, %2 : vector<32x128xf32>
    %5 = arith.subf %0, %4 : vector<32x128xf32>
    %cst_3 = arith.constant dense<0xFF800000> : vector<32xf32>
    %6 = vector.multi_reduction <maximumf>, %5, %cst_3 [1] : vector<32x128xf32> to vector<32xf32>
    %7 = vector.shape_cast %6 : vector<32xf32> to vector<32x1xf32>
    %8 = vector.broadcast %7 : vector<32x1xf32> to vector<32x128xf32>
    %9 = arith.subf %5, %8 : vector<32x128xf32>
    %10 = math.exp %9 : vector<32x128xf32>
    %cst_4 = arith.constant dense<0.000000e+00> : vector<32xf32>
    %11 = vector.multi_reduction <add>, %10, %cst_4 [1] : vector<32x128xf32> to vector<32xf32>
    %12 = vector.shape_cast %11 : vector<32xf32> to vector<32x1xf32>
    %13 = tpu.reciprocal %12 : vector<32x1xf32> -> vector<32x1xf32>
    %14 = vector.broadcast %13 : vector<32x1xf32> to vector<32x128xf32>
    %15 = arith.mulf %10, %14 : vector<32x128xf32>
    %c0_5 = arith.constant 0 : index
    %c0_6 = arith.constant 0 : index
    %16 = vector.load %arg3[%c0_5, %c0_6] : memref<32x128xf32, #tpu.memory_space<vmem>>, vector<32x128xf32>
    tpu.vector_store %arg3[%c0_5, %c0_6], %15 {strides = array<i32>} : memref<32x128xf32, #tpu.memory_space<vmem>>, vector<32x128xf32>,
    return
  }
  func.func @transform_0(%arg0: i32) -> (i32, i32) {
    %c0_i32 = arith.constant 0 : i32
    %c0_i32_0 = arith.constant 0 : i32
    return %arg0, %c0_i32 : i32, i32
  }
  func.func @transform_1(%arg0: i32) -> (i32, i32) {
    %c0_i32 = arith.constant 0 : i32
    %c0_i32_0 = arith.constant 0 : i32
    return %arg0, %c0_i32 : i32, i32
  }
  func.func @transform_2(%arg0: i32) -> (i32, i32) {
    %c0_i32 = arith.constant 0 : i32
    %c0_i32_0 = arith.constant 0 : i32
    return %arg0, %c0_i32 : i32, i32
  }
}

</mosaic_0001>

<llo_original>
// kernel: masked_stable_softmax.1
$region0: #{masked_stable_softmax.1}
  #allocation0 [shape = 'u32[]', space=smem, size = 0x4, offset = 0x4, fixed_abs, tag = 'smem constant byte address 0x4 - core index']
  #allocation1 [shape = 'u32[144,128]{1,0:T(1,128)}', space=vmem, size = 0x12000, scoped, tag = 'internal scratch']
  %s0 = inlined_call_operand.vmem [shape: f32[32,128], index: 0, kind: input, shape index: {}]
  %s1 = inlined_call_operand.vmem [shape: s8[32,128], index: 1, kind: input, shape index: {}]
  %s2 = inlined_call_operand.vmem [shape: f32[32,128], index: 2, kind: output, shape index: {}]
  %s3 = sld [smem:[#allocation0]]
  $region18: #{masked_stable_softmax.1} parent=0
    _
  %s5 = ssub.s32 1, %s3
  %s6 = scalar_select 0, %s5, %s3
  // Predicated region
  $region2: #{masked_stable_softmax.1} parent=0 // pred_check
    _
  $region3: #{masked_stable_softmax.1} parent=0 // pred_check_branch
    %8 = sbr.rel (0) target = $region5
  $region4: #{masked_stable_softmax.1} parent=0 // pred_region
    _
  $region5: #{masked_stable_softmax.1} parent=0 // pred_fallthru
    _
  // Predicated region
  $region6: #{masked_stable_softmax.1} parent=0 // pred_check
    _
  $region7: #{masked_stable_softmax.1} parent=0 // pred_check_branch
    %10 = sbr.rel (0) target = $region9
  $region8: #{masked_stable_softmax.1} parent=0 // pred_region
    _
  $region9: #{masked_stable_softmax.1} parent=0 // pred_fallthru
    _
  %v11 = vld [vmem:[%s0] sm:$0xff]
  %v12 = vld [vmem:[%s0 + $0x8] sm:$0xff]
  %v13 = vld [vmem:[%s0 + $0x10] sm:$0xff]
  %v14 = vld [vmem:[%s0 + $0x18] sm:$0xff]
  %v15 = vld [vmem:[%s1] sm:$0xff]
  %v16 = vunpack.c.0.s8 %v15
  %v17 = vunpack.c.1.s8 %v15
  %v18 = vunpack.c.2.s8 %v15
  %v19 = vunpack.c.3.s8 %v15
  %v20 = vcvt.s32.f32 %v16
  %v21 = vcvt.s32.f32 %v17
  %v22 = vcvt.s32.f32 %v18
  %v23 = vcvt.s32.f32 %v19
  %v24 = vmul.f32 %v20, 1e+08
  %v25 = vmul.f32 %v21, 1e+08
  %v26 = vmul.f32 %v22, 1e+08
  %v27 = vmul.f32 %v23, 1e+08
  %v28 = vsub.f32 %v11, %v24
  %v29 = vsub.f32 %v12, %v25
  %v30 = vsub.f32 %v13, %v26
  %v31 = vsub.f32 %v14, %v27
  %32 = vmax.xlane.f32.xlu0 %v28
  %v33 = vpop.xlane.xlu0 %32
  %34 = vmax.xlane.f32.xlu0 %v29
  %v35 = vpop.xlane.xlu0 %34
  %36 = vmax.xlane.f32.xlu0 %v30
  %v37 = vpop.xlane.xlu0 %36
  %38 = vmax.xlane.f32.xlu0 %v31
  %v39 = vpop.xlane.xlu0 %38
  %v40 = vsub.f32 %v28, %v33
  %v41 = vsub.f32 %v29, %v35
  %v42 = vsub.f32 %v30, %v37
  %v43 = vsub.f32 %v31, %v39
  %v44 = vmul.f32 %v40, 1.442695
  %v45 = vpow.pop %v44
  %v46 = vmul.f32 %v41, 1.442695
  %v47 = vpow.pop %v46
  %v48 = vmul.f32 %v42, 1.442695
  %v49 = vpow.pop %v48
  %v50 = vmul.f32 %v43, 1.442695
  %v51 = vpow.pop %v50
  %52 = vadd.xlane.f32.xlu0 %v45
  %v53 = vpop.xlane.xlu0 %52
  %54 = vadd.xlane.f32.xlu0 %v47
  %v55 = vpop.xlane.xlu0 %54
  %56 = vadd.xlane.f32.xlu0 %v49
  %v57 = vpop.xlane.xlu0 %56
  %58 = vadd.xlane.f32.xlu0 %v51
  %v59 = vpop.xlane.xlu0 %58
  %v60 = vrcp.pop %v53
  %v61 = vrcp.pop %v55
  %v62 = vrcp.pop %v57
  %v63 = vrcp.pop %v59
  %v64 = vmul.f32 %v45, %v60
  %v65 = vmul.f32 %v47, %v61
  %v66 = vmul.f32 %v49, %v62
  %v67 = vmul.f32 %v51, %v63
  %68 = vst [vmem:[%s2] sm:$0xff] %v64
  %69 = vst [vmem:[%s2 + $0x8] sm:$0xff] %v65
  %70 = vst [vmem:[%s2 + $0x10] sm:$0xff] %v66
  %71 = vst [vmem:[%s2 + $0x18] sm:$0xff] %v67
  // Predicated region
  $region10: #{masked_stable_softmax.1} parent=0 // pred_check
    _
  $region11: #{masked_stable_softmax.1} parent=0 // pred_check_branch
    %73 = sbr.rel (0) target = $region13
  $region12: #{masked_stable_softmax.1} parent=0 // pred_region
    _
  $region13: #{masked_stable_softmax.1} parent=0 // pred_fallthru
    _
  // Predicated region
  $region14: #{masked_stable_softmax.1} parent=0 // pred_check
    _
  $region15: #{masked_stable_softmax.1} parent=0 // pred_check_branch
    %75 = sbr.rel (0) target = $region17
  $region16: #{masked_stable_softmax.1} parent=0 // pred_region
    _
  $region17: #{masked_stable_softmax.1} parent=0 // pred_fallthru
    _

</llo_original>
